<compile_context>
chip_gen: v5e
topology: v5e:2x2
jax: 0.10.0
libtpu: 0.0.40
codegen_flags: <defaults>
</compile_context>

<pallas_src>
import jax
import jax.numpy as jnp
from jax import lax
from jax.experimental import pallas as pl
from jax.experimental.pallas import tpu as pltpu

BN_EPS = 1e-5


# ----------------------------------------------------------------------------
# Kernel 1: M-tiled im2col matmul (bf16 MXU, f32 accum) + per-tile BN moments.
# ----------------------------------------------------------------------------
def _conv_moments_kernel(p_ref, w_ref, y_ref, sum_ref, sq_ref):
    # p_ref:   (tm, K)      bf16 im2col patch tile (K = 9*Cin)
    # w_ref:   (K, Cout)    bf16 conv weight matrix
    # y_ref:   (tm, Cout)   bf16 raw conv output tile (halves HBM writeback)
    # sum_ref: (1, 1, Cout) f32 per-tile partial sum   (global BN mean)
    # sq_ref:  (1, 1, Cout) f32 per-tile partial sumsq (global BN var)
    y = jnp.dot(p_ref[...], w_ref[...], preferred_element_type=jnp.float32)
    y_ref[...] = y.astype(y_ref.dtype)
    sum_ref[...] = jnp.sum(y, axis=0, keepdims=True)[None]
    sq_ref[...] = jnp.sum(y * y, axis=0, keepdims=True)[None]


def _pick_tile_m(m):
    # Big tiles: ~0.35 us per grid step dominates small tiles and VMEM headroom
    # is huge (K, Cout tiny).  Cap at 2048 rows, keep >= 2 tiles when possible.
    n_tiles = max(2, pl.cdiv(m, 2048))
    return min(2048, ((pl.cdiv(m, n_tiles) + 7) // 8) * 8)


def conv_with_moments(patches_bf16, wmat_bf16, tile_m):
    m_pad, k = patches_bf16.shape
    cout = wmat_bf16.shape[1]
    n_tiles = m_pad // tile_m
    bytes_accessed = (m_pad * k + k * cout + m_pad * cout) * 2 + 2 * n_tiles * cout * 4
    return pl.pallas_call(
        _conv_moments_kernel,
        out_shape=(
            jax.ShapeDtypeStruct((m_pad, cout), jnp.bfloat16),
            jax.ShapeDtypeStruct((n_tiles, 1, cout), jnp.float32),
            jax.ShapeDtypeStruct((n_tiles, 1, cout), jnp.float32),
        ),
        grid=(n_tiles,),
        in_specs=[
            pl.BlockSpec((tile_m, k), lambda i: (i, 0)),
            pl.BlockSpec((k, cout), lambda i: (0, 0)),
        ],
        out_specs=(
            pl.BlockSpec((tile_m, cout), lambda i: (i, 0)),
            pl.BlockSpec((1, 1, cout), lambda i: (i, 0, 0)),
            pl.BlockSpec((1, 1, cout), lambda i: (i, 0, 0)),
        ),
        compiler_params=pltpu.CompilerParams(dimension_semantics=("parallel",)),
        cost_estimate=pl.CostEstimate(
            flops=2 * m_pad * k * cout, transcendentals=0,
            bytes_accessed=bytes_accessed),
    )(patches_bf16, wmat_bf16)


# ----------------------------------------------------------------------------
# Kernel 2: fused BN-affine + ReLU + MaxPool2d(3, stride=2, padding=1),
# row-band tiled over pooled rows with a 1-row top halo.
# ----------------------------------------------------------------------------
def _bn_relu_pool_kernel(y_ref, halo_ref, scale_ref, shift_ref, o_ref,
                         zpad_ref, rmax_ref):
    # y_ref:    (1, 2*tp, Wo, C) bf16  activation rows owned by this band
    # halo_ref: (1, 1,    Wo, C) bf16  activation row just above the band
    #                                  (clamped duplicate of row 0 when j == 0)
    # scale:    (1, C) f32  gamma / sqrt(var + eps)
    # shift:    (1, C) f32  beta - mean * scale
    # o_ref:    (1, tp, Wo2, C) f32    pooled output band
    # zpad_ref: (2*tp+1, Wo+1, C) f32  BN+ReLU activations, zero left column
    # rmax_ref: (tp, Wo+1, C) f32      row-direction pooling intermediate
    _, rows, wo, c = y_ref.shape
    _, tp, wo2, _ = o_ref.shape
    scale = scale_ref[0]
    shift = shift_ref[0]

    # Left pad column.  Zero is exact only because values are post-ReLU (>= 0).
    # Re-zeroed each step: under megacore partitioning each core has its own
    # scratch, so a program_id == 0 gate would leave the other core dirty.
    zpad_ref[:, 0, :] = jnp.zeros((rows + 1, c), jnp.float32)

    # BatchNorm affine + ReLU (f32 VPU work) on the halo row and band rows.
    zh = jnp.maximum(halo_ref[0, 0].astype(jnp.float32) * scale + shift, 0.0)
    zm = jnp.maximum(y_ref[0].astype(jnp.float32) * scale + shift, 0.0)
    zpad_ref[0, 1:wo + 1, :] = zh
    zpad_ref[1:rows + 1, 1:wo + 1, :] = zm

    # Separable 3x3 / stride-2 max pool: rows first, then columns.
    r = zpad_ref[pl.ds(0, tp, stride=2), :, :]
    r = jnp.maximum(r, zpad_ref[pl.ds(1, tp, stride=2), :, :])
    r = jnp.maximum(r, zpad_ref[pl.ds(2, tp, stride=2), :, :])
    rmax_ref[...] = r

    cmax = rmax_ref[:, pl.ds(0, wo2, stride=2), :]
    cmax = jnp.maximum(cmax, rmax_ref[:, pl.ds(1, wo2, stride=2), :])
    cmax = jnp.maximum(cmax, rmax_ref[:, pl.ds(2, wo2, stride=2), :])
    o_ref[0] = cmax


def _pick_pool_band(ho2):
    # Largest divisor of ho2 that is <= 8; if that yields a single band, split
    # once more so v7x's two TensorCores (and double-buffering) get work.
    tp = 1
    for cand in range(min(ho2, 8), 0, -1):
        if ho2 % cand == 0:
            tp = cand
            break
    if ho2 // tp < 2:
        for cand in range(tp - 1, 0, -1):
            if ho2 % cand == 0 and ho2 // cand >= 2:
                tp = cand
                break
    return tp


def bn_relu_pool(y_nhwc, scale, shift, tp):
    n, ho, wo, c = y_nhwc.shape
    ho2, wo2 = ho // 2, wo // 2
    nbands = ho2 // tp
    rows = 2 * tp
    return pl.pallas_call(
        _bn_relu_pool_kernel,
        out_shape=jax.ShapeDtypeStruct((n, ho2, wo2, c), jnp.float32),
        grid=(n, nbands),
        in_specs=[
            pl.BlockSpec((1, rows, wo, c), lambda i, j: (i, j, 0, 0)),
            pl.BlockSpec((1, 1, wo, c),
                         lambda i, j: (i, jnp.maximum(2 * tp * j - 1, 0), 0, 0)),
            pl.BlockSpec((1, c), lambda i, j: (0, 0)),
            pl.BlockSpec((1, c), lambda i, j: (0, 0)),
        ],
        out_specs=pl.BlockSpec((1, tp, wo2, c), lambda i, j: (i, j, 0, 0)),
        scratch_shapes=[
            pltpu.VMEM((rows + 1, wo + 1, c), jnp.float32),
            pltpu.VMEM((tp, wo + 1, c), jnp.float32),
        ],
        compiler_params=pltpu.CompilerParams(
            dimension_semantics=("parallel", "parallel")),
    )(y_nhwc, y_nhwc, scale, shift)


# ----------------------------------------------------------------------------
# Plain-JAX glue: bf16 im2col patch extraction for the 3x3 / stride-2 / pad-1 conv.
# ----------------------------------------------------------------------------
def _im2col_3x3_s2_p1(x_nhwc):
    n, h, w, c = x_nhwc.shape
    ho = (h - 1) // 2 + 1
    wo = (w - 1) // 2 + 1
    xp = jnp.pad(x_nhwc, ((0, 0), (1, 1), (1, 1), (0, 0)))
    cols = [xp[:, kh:kh + 2 * ho:2, kw:kw + 2 * wo:2, :]
            for kh in range(3) for kw in range(3)]
    patches = jnp.stack(cols, axis=3)          # (N, Ho, Wo, 9, C), order (kh, kw, cin)
    return patches.reshape(n * ho * wo, 9 * c)


# ----------------------------------------------------------------------------
# ShuffleInitBlock forward (PyTorch-facing NCHW interface).
# ----------------------------------------------------------------------------
def shuffle_init_block(x_nchw, conv_weight, bn_gamma, bn_beta):
    n, cin, h, w = x_nchw.shape
    cout = conv_weight.shape[0]
    assert h % 4 == 0 and w % 4 == 0, "TODO(synk): support odd spatial sizes"
    ho, wo = h // 2, w // 2
    ho2 = ho // 2
    m = n * ho * wo
    k = 9 * cin

    # NHWC + bf16 up-front: pad / im2col / conv intermediates are all bf16.
    x = jnp.transpose(x_nchw, (0, 2, 3, 1)).astype(jnp.bfloat16)
    patches = _im2col_3x3_s2_p1(x)                                      # (M, 9*Cin) bf16
    wmat = jnp.transpose(conv_weight, (2, 3, 1, 0)).reshape(k, cout)
    wmat = wmat.astype(jnp.bfloat16)

    tile_m = _pick_tile_m(m)
    m_pad = ((m + tile_m - 1) // tile_m) * tile_m
    if m_pad != m:
        # zero rows contribute nothing to the BN moments and are sliced off below
        patches = jnp.pad(patches, ((0, m_pad - m), (0, 0)))

    y, tsum, tsq = conv_with_moments(patches, wmat, tile_m)             # y bf16

    # Global (training-mode) BatchNorm statistics over all N*Ho*Wo positions.
    # f32 per-tile partials -> tiny (Cout,) tree reduction in plain JAX.
    total_sum = jnp.sum(tsum, axis=(0, 1))
    total_sq = jnp.sum(tsq, axis=(0, 1))
    mean = total_sum / m
    var = jnp.maximum(total_sq / m - mean * mean, 0.0)                  # clamp cancellation
    inv_std = lax.rsqrt(var + BN_EPS)
    scale = bn_gamma.astype(jnp.float32) * inv_std
    shift = bn_beta.astype(jnp.float32) - mean * scale

    y_nhwc = y[:m].reshape(n, ho, wo, cout)
    tp = _pick_pool_band(ho2)
    # NOTE: bn_relu_pool's zero left-pad column is only valid because the ReLU
    # inside it makes all pooled values >= 0 -- do not reuse it without ReLU.
    pooled = bn_relu_pool(y_nhwc, scale.reshape(1, cout), shift.reshape(1, cout), tp)
    return jnp.transpose(pooled, (0, 3, 1, 2))                          # back to NCHW


# ----------------------------------------------------------------------------
# Plain-JAX reference (matches PyTorch training-mode forward) for validation.
# ----------------------------------------------------------------------------
def _reference_forward(x_nchw, conv_weight, bn_gamma, bn_beta):
    y = lax.conv_general_dilated(
        x_nchw, conv_weight, window_strides=(2, 2), padding=((1, 1), (1, 1)),
        dimension_numbers=("NCHW", "OIHW", "NCHW"))
    mean = jnp.mean(y, axis=(0, 2, 3), keepdims=True)
    var = jnp.mean((y - mean) ** 2, axis=(0, 2, 3), keepdims=True)      # biased
    g = bn_gamma.reshape(1, -1, 1, 1)
    b = bn_beta.reshape(1, -1, 1, 1)
    y = (y - mean) * lax.rsqrt(var + BN_EPS) * g + b
    y = jnp.maximum(y, 0.0)
    return lax.reduce_window(
        y, -jnp.inf, lax.max, window_dimensions=(1, 1, 3, 3),
        window_strides=(1, 1, 2, 2), padding=((0, 0), (0, 0), (1, 1), (1, 1)))


if __name__ == "__main__":
    def make_inputs(key, n, cin, h, w, cout):
        k_x, k_w, k_g, k_b = jax.random.split(key, 4)
        x = jax.random.normal(k_x, (n, cin, h, w), dtype=jnp.float32)
        wgt = jax.random.normal(k_w, (cout, cin, 3, 3), dtype=jnp.float32)
        wgt = wgt * (2.0 / (cin * 9)) ** 0.5
        g = 1.0 + 0.1 * jax.random.normal(k_g, (cout,), dtype=jnp.float32)
        b = 0.1 * jax.random.normal(k_b, (cout,), dtype=jnp.float32)
        return x, wgt, g, b

    fwd = jax.jit(shuffle_init_block)

    # Primary small test (2, 4, 16, 16) -> (2, 16, 4, 4).
    x, wgt, g, b = make_inputs(jax.random.PRNGKey(0), 2, 4, 16, 16, 16)
    out = jax.block_until_ready(fwd(x, wgt, g, b))
    assert out.shape == (2, 16, 4, 4), out.shape
    assert bool(jnp.all(jnp.isfinite(out)))
    ref = jax.block_until_ready(_reference_forward(x, wgt, g, b))
    err = float(jnp.max(jnp.abs(out - ref)))
    assert bool(jnp.allclose(out, ref, rtol=1e-1, atol=1e-1)), err

    # Second test: stem-like channel counts (Cin=3, Cout=24), multiple pool bands.
    x2, wgt2, g2, b2 = make_inputs(jax.random.PRNGKey(1), 1, 3, 32, 32, 24)
    out2 = jax.block_until_ready(fwd(x2, wgt2, g2, b2))
    assert out2.shape == (1, 24, 8, 8), out2.shape
    ref2 = jax.block_until_ready(_reference_forward(x2, wgt2, g2, b2))
    err2 = float(jnp.max(jnp.abs(out2 - ref2)))
    assert bool(jnp.allclose(out2, ref2, rtol=1e-1, atol=1e-1)), err2

    print("KERNEL_OK")
</pallas_src>

<mosaic_0001>
module attributes {stable_mosaic.version = 11 : i64} {
  func.func @_conv_moments_kernel(%arg0: i32, %arg1: memref<64x36xbf16, #tpu.memory_space<vmem>>, %arg2: memref<36x16xbf16, #tpu.memory_space<vmem>>, %arg3: memref<64x16xbf16, #tpu.memory_space<vmem>>, %arg4: memref<1x1x16xf32, #tpu.memory_space<vmem>>, %arg5: memref<1x1x16xf32, #tpu.memory_space<vmem>>) attributes {dimension_semantics = [#tpu.dimension_semantics<parallel>], iteration_bounds = array<i64: 2>, scalar_prefetch = 0 : i64, scratch_operands = 0 : i64, tpu.core_type = #tpu.core_type<tc>, window_params = [{transform_indices = @transform_0, window_bounds = array<i64: 64, 36>}, {pipeline_mode = #tpu.pipeline_mode<synchronous>, transform_indices = @transform_1, window_bounds = array<i64: 36, 16>}, {transform_indices = @transform_2, window_bounds = array<i64: 64, 16>}, {transform_indices = @transform_3, window_bounds = array<i64: 1, 1, 16>}, {transform_indices = @transform_4, window_bounds = array<i64: 1, 1, 16>}]} {
    %c0 = arith.constant 0 : index
    %c0_0 = arith.constant 0 : index
    %0 = vector.load %arg1[%c0, %c0_0] : memref<64x36xbf16, #tpu.memory_space<vmem>>, vector<64x36xbf16>
    %c0_1 = arith.constant 0 : index
    %c0_2 = arith.constant 0 : index
    %1 = vector.load %arg2[%c0_1, %c0_2] : memref<36x16xbf16, #tpu.memory_space<vmem>>, vector<36x16xbf16>
    %cst = arith.constant dense<0.000000e+00> : vector<64x16xf32>
    %2 = tpu.matmul %0, %1, %cst {dimension_numbers = #tpu.dot_dimension_numbers<[1], [0], [0], [1], [0, 0, 1, 1], [], []>} : vector<64x36xbf16>, vector<36x16xbf16>, vector<64x16xf32> -> vector<64x16xf32>
    %3 = arith.truncf %2 : vector<64x16xf32> to vector<64x16xbf16>
    %c0_3 = arith.constant 0 : index
    %c0_4 = arith.constant 0 : index
    %4 = vector.load %arg3[%c0_3, %c0_4] : memref<64x16xbf16, #tpu.memory_space<vmem>>, vector<64x16xbf16>
    tpu.vector_store %arg3[%c0_3, %c0_4], %3 {strides = array<i32>} : memref<64x16xbf16, #tpu.memory_space<vmem>>, vector<64x16xbf16>,
    %cst_5 = arith.constant dense<0.000000e+00> : vector<16xf32>
    %5 = vector.multi_reduction <add>, %2, %cst_5 [0] : vector<64x16xf32> to vector<16xf32>
    %6 = vector.shape_cast %5 : vector<16xf32> to vector<1x16xf32>
    %7 = vector.shape_cast %6 : vector<1x16xf32> to vector<1x1x16xf32>
    %c0_6 = arith.constant 0 : index
    %c0_7 = arith.constant 0 : index
    %c0_8 = arith.constant 0 : index
    %8 = vector.load %arg4[%c0_6, %c0_7, %c0_8] : memref<1x1x16xf32, #tpu.memory_space<vmem>>, vector<1x1x16xf32>
    tpu.vector_store %arg4[%c0_6, %c0_7, %c0_8], %7 {strides = array<i32>} : memref<1x1x16xf32, #tpu.memory_space<vmem>>, vector<1x1x16xf32>,
    %9 = arith.mulf %2, %2 : vector<64x16xf32>
    %cst_9 = arith.constant dense<0.000000e+00> : vector<16xf32>
    %10 = vector.multi_reduction <add>, %9, %cst_9 [0] : vector<64x16xf32> to vector<16xf32>
    %11 = vector.shape_cast %10 : vector<16xf32> to vector<1x16xf32>
    %12 = vector.shape_cast %11 : vector<1x16xf32> to vector<1x1x16xf32>
    %c0_10 = arith.constant 0 : index
    %c0_11 = arith.constant 0 : index
    %c0_12 = arith.constant 0 : index
    %13 = vector.load %arg5[%c0_10, %c0_11, %c0_12] : memref<1x1x16xf32, #tpu.memory_space<vmem>>, vector<1x1x16xf32>
    tpu.vector_store %arg5[%c0_10, %c0_11, %c0_12], %12 {strides = array<i32>} : memref<1x1x16xf32, #tpu.memory_space<vmem>>, vector<1x1x16xf32>,
    return
  }
  func.func @transform_0(%arg0: i32) -> (i32, i32) {
    %c0_i32 = arith.constant 0 : i32
    %c0_i32_0 = arith.constant 0 : i32
    return %arg0, %c0_i32 : i32, i32
  }
  func.func @transform_1(%arg0: i32) -> (i32, i32) {
    %c0_i32 = arith.constant 0 : i32
    %c0_i32_0 = arith.constant 0 : i32
    %c0_i32_1 = arith.constant 0 : i32
    return %c0_i32, %c0_i32_0 : i32, i32
  }
  func.func @transform_2(%arg0: i32) -> (i32, i32) {
    %c0_i32 = arith.constant 0 : i32
    %c0_i32_0 = arith.constant 0 : i32
    return %arg0, %c0_i32 : i32, i32
  }
  func.func @transform_3(%arg0: i32) -> (i32, i32, i32) {
    %c0_i32 = arith.constant 0 : i32
    %c0_i32_0 = arith.constant 0 : i32
    %c0_i32_1 = arith.constant 0 : i32
    return %arg0, %c0_i32, %c0_i32_0 : i32, i32, i32
  }
  func.func @transform_4(%arg0: i32) -> (i32, i32, i32) {
    %c0_i32 = arith.constant 0 : i32
    %c0_i32_0 = arith.constant 0 : i32
    %c0_i32_1 = arith.constant 0 : i32
    return %arg0, %c0_i32, %c0_i32_0 : i32, i32, i32
  }
}

module attributes {stable_mosaic.version = 11 : i64} {
  func.func @_bn_relu_pool_kernel(%arg0: i32, %arg1: i32, %arg2: memref<1x4x8x16xbf16, #tpu.memory_space<vmem>>, %arg3: memref<1x1x8x16xbf16, #tpu.memory_space<vmem>>, %arg4: memref<1x16xf32, #tpu.memory_space<vmem>>, %arg5: memref<1x16xf32, #tpu.memory_space<vmem>>, %arg6: memref<1x2x4x16xf32, #tpu.memory_space<vmem>>, %arg7: memref<5x9x16xf32, #tpu.memory_space<vmem>>, %arg8: memref<2x9x16xf32, #tpu.memory_space<vmem>>) attributes {dimension_semantics = [#tpu.dimension_semantics<parallel>, #tpu.dimension_semantics<parallel>], iteration_bounds = array<i64: 2, 2>, scalar_prefetch = 0 : i64, scratch_operands = 2 : i64, tpu.core_type = #tpu.core_type<tc>, window_params = [{transform_indices = @transform_0, window_bounds = array<i64: 1, 4, 8, 16>}, {transform_indices = @transform_1, window_bounds = array<i64: 1, 1, 8, 16>}, {pipeline_mode = #tpu.pipeline_mode<synchronous>, transform_indices = @transform_2, window_bounds = array<i64: 1, 16>}, {pipeline_mode = #tpu.pipeline_mode<synchronous>, transform_indices = @transform_3, window_bounds = array<i64: 1, 16>}, {transform_indices = @transform_4, window_bounds = array<i64: 1, 2, 4, 16>}]} {
    %c0 = arith.constant 0 : index
    %c0_0 = arith.constant 0 : index
    %0 = vector.load %arg4[%c0, %c0_0] : memref<1x16xf32, #tpu.memory_space<vmem>>, vector<1x16xf32>
    %1 = vector.shape_cast %0 : vector<1x16xf32> to vector<16xf32>
    %c0_1 = arith.constant 0 : index
    %c0_2 = arith.constant 0 : index
    %2 = vector.load %arg5[%c0_1, %c0_2] : memref<1x16xf32, #tpu.memory_space<vmem>>, vector<1x16xf32>
    %3 = vector.shape_cast %2 : vector<1x16xf32> to vector<16xf32>
    %cst = arith.constant 0.000000e+00 : f32
    %4 = vector.broadcast %cst : f32 to vector<5x16xf32>
    %c0_3 = arith.constant 0 : index
    %c0_4 = arith.constant 0 : index
    %c0_5 = arith.constant 0 : index
    %5 = vector.load %arg7[%c0_3, %c0_4, %c0_5] : memref<5x9x16xf32, #tpu.memory_space<vmem>>, vector<5x1x16xf32>
    %6 = vector.shape_cast %5 : vector<5x1x16xf32> to vector<5x16xf32>
    %7 = vector.shape_cast %4 : vector<5x16xf32> to vector<5x1x16xf32>
    tpu.vector_store %arg7[%c0_3, %c0_4, %c0_5], %7 {strides = array<i32>} : memref<5x9x16xf32, #tpu.memory_space<vmem>>, vector<5x1x16xf32>,
    %c0_6 = arith.constant 0 : index
    %c0_7 = arith.constant 0 : index
    %c0_8 = arith.constant 0 : index
    %c0_9 = arith.constant 0 : index
    %8 = vector.load %arg3[%c0_6, %c0_7, %c0_8, %c0_9] : memref<1x1x8x16xbf16, #tpu.memory_space<vmem>>, vector<1x1x8x16xbf16>
    %9 = vector.shape_cast %8 : vector<1x1x8x16xbf16> to vector<8x16xbf16>
    %10 = arith.extf %9 : vector<8x16xbf16> to vector<8x16xf32>
    %11 = vector.shape_cast %1 : vector<16xf32> to vector<1x16xf32>
    %12 = vector.broadcast %11 : vector<1x16xf32> to vector<8x16xf32>
    %13 = arith.mulf %10, %12 : vector<8x16xf32>
    %14 = vector.shape_cast %3 : vector<16xf32> to vector<1x16xf32>
    %15 = vector.broadcast %14 : vector<1x16xf32> to vector<8x16xf32>
    %16 = arith.addf %13, %15 : vector<8x16xf32>
    %cst_10 = arith.constant 0.000000e+00 : f32
    %17 = vector.broadcast %cst_10 : f32 to vector<8x16xf32>
    %18 = arith.maximumf %16, %17 : vector<8x16xf32>
    %c0_11 = arith.constant 0 : index
    %c0_12 = arith.constant 0 : index
    %c0_13 = arith.constant 0 : index
    %c0_14 = arith.constant 0 : index
    %19 = vector.load %arg2[%c0_11, %c0_12, %c0_13, %c0_14] : memref<1x4x8x16xbf16, #tpu.memory_space<vmem>>, vector<1x4x8x16xbf16>
    %20 = vector.shape_cast %19 : vector<1x4x8x16xbf16> to vector<4x8x16xbf16>
    %21 = arith.extf %20 : vector<4x8x16xbf16> to vector<4x8x16xf32>
    %22 = vector.shape_cast %1 : vector<16xf32> to vector<1x1x16xf32>
    %23 = vector.broadcast %22 : vector<1x1x16xf32> to vector<4x8x16xf32>
    %24 = arith.mulf %21, %23 : vector<4x8x16xf32>
    %25 = vector.shape_cast %3 : vector<16xf32> to vector<1x1x16xf32>
    %26 = vector.broadcast %25 : vector<1x1x16xf32> to vector<4x8x16xf32>
    %27 = arith.addf %24, %26 : vector<4x8x16xf32>
    %cst_15 = arith.constant 0.000000e+00 : f32
    %28 = vector.broadcast %cst_15 : f32 to vector<4x8x16xf32>
    %29 = arith.maximumf %27, %28 : vector<4x8x16xf32>
    %c0_16 = arith.constant 0 : index
    %c1 = arith.constant 1 : index
    %c0_17 = arith.constant 0 : index
    %30 = vector.load %arg7[%c0_16, %c1, %c0_17] : memref<5x9x16xf32, #tpu.memory_space<vmem>>, vector<1x8x16xf32>
    %31 = vector.shape_cast %30 : vector<1x8x16xf32> to vector<8x16xf32>
    %32 = vector.shape_cast %18 : vector<8x16xf32> to vector<1x8x16xf32>
    tpu.vector_store %arg7[%c0_16, %c1, %c0_17], %32 {strides = array<i32>} : memref<5x9x16xf32, #tpu.memory_space<vmem>>, vector<1x8x16xf32>,
    %c1_18 = arith.constant 1 : index
    %c1_19 = arith.constant 1 : index
    %c0_20 = arith.constant 0 : index
    %33 = vector.load %arg7[%c1_18, %c1_19, %c0_20] : memref<5x9x16xf32, #tpu.memory_space<vmem>>, vector<4x8x16xf32>
    tpu.vector_store %arg7[%c1_18, %c1_19, %c0_20], %29 {strides = array<i32>} : memref<5x9x16xf32, #tpu.memory_space<vmem>>, vector<4x8x16xf32>,
    %c0_21 = arith.constant 0 : index
    %c0_22 = arith.constant 0 : index
    %c0_23 = arith.constant 0 : index
    %34 = tpu.strided_load %arg7[%c0_21, %c0_22, %c0_23] {strides = array<i32: 2, 1, 1>} : memref<5x9x16xf32, #tpu.memory_space<vmem>>, vector<2x9x16xf32>
    %c1_24 = arith.constant 1 : index
    %c0_25 = arith.constant 0 : index
    %c0_26 = arith.constant 0 : index
    %35 = tpu.strided_load %arg7[%c1_24, %c0_25, %c0_26] {strides = array<i32: 2, 1, 1>} : memref<5x9x16xf32, #tpu.memory_space<vmem>>, vector<2x9x16xf32>
    %36 = arith.maximumf %34, %35 : vector<2x9x16xf32>
    %c2 = arith.constant 2 : index
    %c0_27 = arith.constant 0 : index
    %c0_28 = arith.constant 0 : index
    %37 = tpu.strided_load %arg7[%c2, %c0_27, %c0_28] {strides = array<i32: 2, 1, 1>} : memref<5x9x16xf32, #tpu.memory_space<vmem>>, vector<2x9x16xf32>
    %38 = arith.maximumf %36, %37 : vector<2x9x16xf32>
    %c0_29 = arith.constant 0 : index
    %c0_30 = arith.constant 0 : index
    %c0_31 = arith.constant 0 : index
    %39 = vector.load %arg8[%c0_29, %c0_30, %c0_31] : memref<2x9x16xf32, #tpu.memory_space<vmem>>, vector<2x9x16xf32>
    tpu.vector_store %arg8[%c0_29, %c0_30, %c0_31], %38 {strides = array<i32>} : memref<2x9x16xf32, #tpu.memory_space<vmem>>, vector<2x9x16xf32>,
    %c0_32 = arith.constant 0 : index
    %c0_33 = arith.constant 0 : index
    %c0_34 = arith.constant 0 : index
    %40 = tpu.strided_load %arg8[%c0_32, %c0_33, %c0_34] {strides = array<i32: 1, 2, 1>} : memref<2x9x16xf32, #tpu.memory_space<vmem>>, vector<2x4x16xf32>
    %c0_35 = arith.constant 0 : index
    %c1_36 = arith.constant 1 : index
    %c0_37 = arith.constant 0 : index
    %41 = tpu.strided_load %arg8[%c0_35, %c1_36, %c0_37] {strides = array<i32: 1, 2, 1>} : memref<2x9x16xf32, #tpu.memory_space<vmem>>, vector<2x4x16xf32>
    %42 = arith.maximumf %40, %41 : vector<2x4x16xf32>
    %c0_38 = arith.constant 0 : index
    %c2_39 = arith.constant 2 : index
    %c0_40 = arith.constant 0 : index
    %43 = tpu.strided_load %arg8[%c0_38, %c2_39, %c0_40] {strides = array<i32: 1, 2, 1>} : memref<2x9x16xf32, #tpu.memory_space<vmem>>, vector<2x4x16xf32>
    %44 = arith.maximumf %42, %43 : vector<2x4x16xf32>
    %c0_41 = arith.constant 0 : index
    %c0_42 = arith.constant 0 : index
    %c0_43 = arith.constant 0 : index
    %c0_44 = arith.constant 0 : index
    %45 = vector.load %arg6[%c0_41, %c0_42, %c0_43, %c0_44] : memref<1x2x4x16xf32, #tpu.memory_space<vmem>>, vector<1x2x4x16xf32>
    %46 = vector.shape_cast %45 : vector<1x2x4x16xf32> to vector<2x4x16xf32>
    %47 = vector.shape_cast %44 : vector<2x4x16xf32> to vector<1x2x4x16xf32>
    tpu.vector_store %arg6[%c0_41, %c0_42, %c0_43, %c0_44], %47 {strides = array<i32>} : memref<1x2x4x16xf32, #tpu.memory_space<vmem>>, vector<1x2x4x16xf32>,
    return
  }
  func.func @transform_0(%arg0: i32, %arg1: i32) -> (i32, i32, i32, i32) {
    %c0_i32 = arith.constant 0 : i32
    %c0_i32_0 = arith.constant 0 : i32
    %c0_i32_1 = arith.constant 0 : i32
    return %arg0, %arg1, %c0_i32, %c0_i32_0 : i32, i32, i32, i32
  }
  func.func @transform_1(%arg0: i32, %arg1: i32) -> (i32, i32, i32, i32) {
    %c4_i32 = arith.constant 4 : i32
    %0 = arith.muli %c4_i32, %arg1 : i32
    %c1_i32 = arith.constant 1 : i32
    %1 = arith.subi %0, %c1_i32 : i32
    %c0_i32 = arith.constant 0 : i32
    %2 = arith.maxsi %1, %c0_i32 : i32
    %c0_i32_0 = arith.constant 0 : i32
    %c0_i32_1 = arith.constant 0 : i32
    %c0_i32_2 = arith.constant 0 : i32
    return %arg0, %2, %c0_i32_0, %c0_i32_1 : i32, i32, i32, i32
  }
  func.func @transform_2(%arg0: i32, %arg1: i32) -> (i32, i32) {
    %c0_i32 = arith.constant 0 : i32
    %c0_i32_0 = arith.constant 0 : i32
    %c0_i32_1 = arith.constant 0 : i32
    return %c0_i32, %c0_i32_0 : i32, i32
  }
  func.func @transform_3(%arg0: i32, %arg1: i32) -> (i32, i32) {
    %c0_i32 = arith.constant 0 : i32
    %c0_i32_0 = arith.constant 0 : i32
    %c0_i32_1 = arith.constant 0 : i32
    return %c0_i32, %c0_i32_0 : i32, i32
  }
  func.func @transform_4(%arg0: i32, %arg1: i32) -> (i32, i32, i32, i32) {
    %c0_i32 = arith.constant 0 : i32
    %c0_i32_0 = arith.constant 0 : i32
    %c0_i32_1 = arith.constant 0 : i32
    return %arg0, %arg1, %c0_i32, %c0_i32_0 : i32, i32, i32, i32
  }
}

</mosaic_0001>

<llo_original>
// kernel: shuffle_init_block.2
$region0: #{shuffle_init_block.2}
  #allocation0 [shape = 'u32[]', space=smem, size = 0x4, offset = 0x4, fixed_abs, tag = 'smem constant byte address 0x4 - core index']
  #allocation1 [shape = 'u32[72,128]{1,0:T(1,128)}', space=vmem, size = 0x9000, scoped, tag = 'internal scratch']
  %s0 = inlined_call_operand.vmem [shape: bf16[128,36], index: 0, kind: input, shape index: {}]
  %s1 = inlined_call_operand.vmem [shape: bf16[36,16], index: 1, kind: input, shape index: {}]
  %s2 = inlined_call_operand.vmem [shape: bf16[128,16], index: 2, kind: output, shape index: {0}]
  %s3 = inlined_call_operand.vmem [shape: f32[2,1,16], index: 3, kind: output, shape index: {1}]
  %s4 = inlined_call_operand.vmem [shape: f32[2,1,16], index: 4, kind: output, shape index: {2}]
  %5 = xla_tuple %s2, %s3, %s4
  %s6 = sld [smem:[#allocation0]]
  $region57: #{shuffle_init_block.2} parent=0
    _
  %s8 = ssub.s32 1, %s6
  %s9 = scalar_select 0, %s8, %s6
  loop: start=0, step=1, limit=4
  $region2: #{shuffle_init_block.2} parent=0 // loop_pre_header
    _
  $region3: #{shuffle_init_block.2} parent=0 // loop_header
    %s11 = sphi 0, %s15
    %p12 = scmp.ge.s32.totalorder %s11, 4
    %s21 = sphi 0, %s23
    %s24 = sphi 0, %s21
    %s25 = sphi 0, %s24
    %s41 = sphi 0, %s25
    %s45 = sphi 0, %s45
    %s47 = sphi 0, %s45
    %s48 = sphi 0, %s47
    %s62 = sphi 0, %s48
    %s68 = sphi 0, %s70
    %s71 = sphi 0, %s68
    %s72 = sphi 0, %s71
    %s88 = sphi 0, %s72
    %s94 = sphi 0, %s96
    %s97 = sphi 0, %s94
    %s98 = sphi 0, %s97
    %s114 = sphi 0, %s98
    %s120 = sphi 0, %s122
    %s123 = sphi 0, %s120
    %s124 = sphi 0, %s123
    %s140 = sphi 0, %s124
  $region4: #{shuffle_init_block.2} parent=0 // loop_header_branch
    %14 = sbr.rel (%p12) target = $region8
  $region5: #{shuffle_init_block.2} parent=0 // loop_body
    %s16 = ssub.s32 %s11, 1
    %s17 = ssub.s32 %s11, 2
    %s18 = sadd.s32 %s11, 1
    %s19 = ssub.s32 %s11, %s18
    %p20 = scmp.eq.s32.totalorder %s19, 0
    %s22 = sadd.s32 %s21, 1
    %s23 = scalar_select %p20, %s21, %s22
    %p26 = pneg %p20
    %p27 = scmp.eq.s32.totalorder %s11, 1
    %p28 = por %p26, %p27
    %p29 = scmp.ne.s32.totalorder %s21, %s24
    %p30 = scmp.eq.s32.totalorder %s11, 0
    %p31 = por %p29, %p30
    %p32 = scmp.ne.s32.totalorder %s21, %s24
    %p33 = scmp.eq.s32.totalorder %s16, 1
    %p34 = por %p32, %p33
    %p35 = scmp.ne.s32.totalorder %s24, %s25
    %p36 = scmp.eq.s32.totalorder %s16, 0
    %p37 = por %p35, %p36
    %p38 = scmp.ne.s32.totalorder %s24, %s25
    %p39 = scmp.eq.s32.totalorder %s17, 1
    %p40 = por %p38, %p39
    %p42 = scmp.ne.s32.totalorder %s25, %s41
    %p43 = scmp.eq.s32.totalorder %s17, 0
    %p44 = por %p42, %p43
    %s46 = sadd.s32 %s45, 1
    %p49 = scmp.eq.s32.totalorder %s11, 1
    %p50 = scmp.ne.s32.totalorder %s45, %s47
    %p51 = scmp.eq.s32.totalorder %s11, 0
    %p52 = por %p50, %p51
    %p53 = scmp.ne.s32.totalorder %s45, %s47
    %p54 = scmp.eq.s32.totalorder %s16, 1
    %p55 = por %p53, %p54
    %p56 = scmp.ne.s32.totalorder %s47, %s48
    %p57 = scmp.eq.s32.totalorder %s16, 0
    %p58 = por %p56, %p57
    %p59 = scmp.ne.s32.totalorder %s47, %s48
    %p60 = scmp.eq.s32.totalorder %s17, 1
    %p61 = por %p59, %p60
    %p63 = scmp.ne.s32.totalorder %s48, %s62
    %p64 = scmp.eq.s32.totalorder %s17, 0
    %p65 = por %p63, %p64
    %s66 = ssub.s32 %s11, %s18
    %p67 = scmp.eq.s32.totalorder %s66, 0
    %s69 = sadd.s32 %s68, 1
    %s70 = scalar_select %p67, %s68, %s69
    %p73 = pneg %p67
    %p74 = scmp.eq.s32.totalorder %s11, 1
    %p75 = por %p73, %p74
    %p76 = scmp.ne.s32.totalorder %s68, %s71
    %p77 = scmp.eq.s32.totalorder %s11, 0
    %p78 = por %p76, %p77
    %p79 = scmp.ne.s32.totalorder %s68, %s71
    %p80 = scmp.eq.s32.totalorder %s16, 1
    %p81 = por %p79, %p80
    %p82 = scmp.ne.s32.totalorder %s71, %s72
    %p83 = scmp.eq.s32.totalorder %s16, 0
    %p84 = por %p82, %p83
    %p85 = scmp.ne.s32.totalorder %s71, %s72
    %p86 = scmp.eq.s32.totalorder %s17, 1
    %p87 = por %p85, %p86
    %p89 = scmp.ne.s32.totalorder %s72, %s88
    %p90 = scmp.eq.s32.totalorder %s17, 0
    %p91 = por %p89, %p90
    %s92 = ssub.s32 %s11, %s18
    %p93 = scmp.eq.s32.totalorder %s92, 0
    %s95 = sadd.s32 %s94, 1
    %s96 = scalar_select %p93, %s94, %s95
    %p99 = pneg %p93
    %p100 = scmp.eq.s32.totalorder %s11, 1
    %p101 = por %p99, %p100
    %p102 = scmp.ne.s32.totalorder %s94, %s97
    %p103 = scmp.eq.s32.totalorder %s11, 0
    %p104 = por %p102, %p103
    %p105 = scmp.ne.s32.totalorder %s94, %s97
    %p106 = scmp.eq.s32.totalorder %s16, 1
    %p107 = por %p105, %p106
    %p108 = scmp.ne.s32.totalorder %s97, %s98
    %p109 = scmp.eq.s32.totalorder %s16, 0
    %p110 = por %p108, %p109
    %p111 = scmp.ne.s32.totalorder %s97, %s98
    %p112 = scmp.eq.s32.totalorder %s17, 1
    %p113 = por %p111, %p112
    %p115 = scmp.ne.s32.totalorder %s98, %s114
    %p116 = scmp.eq.s32.totalorder %s17, 0
    %p117 = por %p115, %p116
    %s118 = ssub.s32 %s11, %s18
    %p119 = scmp.eq.s32.totalorder %s118, 0
    %s121 = sadd.s32 %s120, 1
    %s122 = scalar_select %p119, %s120, %s121
    %p125 = pneg %p119
    %p126 = scmp.eq.s32.totalorder %s11, 1
    %p127 = por %p125, %p126
    %p128 = scmp.ne.s32.totalorder %s120, %s123
    %p129 = scmp.eq.s32.totalorder %s11, 0
    %p130 = por %p128, %p129
    %p131 = scmp.ne.s32.totalorder %s120, %s123
    %p132 = scmp.eq.s32.totalorder %s16, 1
    %p133 = por %p131, %p132
    %p134 = scmp.ne.s32.totalorder %s123, %s124
    %p135 = scmp.eq.s32.totalorder %s16, 0
    %p136 = por %p134, %p135
    %p137 = scmp.ne.s32.totalorder %s123, %s124
    %p138 = scmp.eq.s32.totalorder %s17, 1
    %p139 = por %p137, %p138
    %p141 = scmp.ne.s32.totalorder %s124, %s140
    %p142 = scmp.eq.s32.totalorder %s17, 0
    %p143 = por %p141, %p142
    %p144 = scmp.le.s32.totalorder 1, %s11
    %p145 = scmp.lt.s32.totalorder %s11, 3
    %p146 = pnand %p144, %p145
    %p147 = pneg %p146
    // Predicated region
    $region9: #{shuffle_init_block.2} parent=5 // pred_check
      _
    $region10: #{shuffle_init_block.2} parent=5 // pred_check_branch
      %149 = sbr.rel (%p146) target = $region12
    $region11: #{shuffle_init_block.2} parent=5 // pred_region
      %s150 = ssub.s32 %s11, 1
      // Predicated region
      $region13: #{shuffle_init_block.2} parent=11 // pred_check
        %p151 = pneg %p58
      $region14: #{shuffle_init_block.2} parent=11 // pred_check_branch
        %153 = sbr.rel (%p151) target = $region16
      $region15: #{shuffle_init_block.2} parent=11 // pred_region
        _
      $region16: #{shuffle_init_block.2} parent=11 // pred_fallthru
        _
    $region12: #{shuffle_init_block.2} parent=5 // pred_fallthru
      _
    %p154 = scmp.lt.s32.totalorder %s11, 2
    // Predicated region
    $region17: #{shuffle_init_block.2} parent=5 // pred_check
      %p155 = pneg %p154
    $region18: #{shuffle_init_block.2} parent=5 // pred_check_branch
      %157 = sbr.rel (%p155) target = $region20
    $region19: #{shuffle_init_block.2} parent=5 // pred_region
      // Predicated region
      $region21: #{shuffle_init_block.2} parent=19 // pred_check
        %p158 = pneg %p31
      $region22: #{shuffle_init_block.2} parent=19 // pred_check_branch
        %160 = sbr.rel (%p158) target = $region24
      $region23: #{shuffle_init_block.2} parent=19 // pred_region
        %s161 = smul.u32 8, %s11
        %p162 = scmp.lt.s32.totalorder %s161, 15
        %s163 = scalar_select %p162, %s161, 15
        %s164 = smul.addr %s163, 4
        %s165 = scalar_lea.vmem %s0, %s164
        %s166 = smul.u32 8, %s11
      $region24: #{shuffle_init_block.2} parent=19 // pred_fallthru
        _
    $region20: #{shuffle_init_block.2} parent=5 // pred_fallthru
      _
    %p167 = scmp.le.s32.totalorder 1, %s11
    %p168 = scmp.lt.s32.totalorder %s11, 3
    %p169 = pnand %p167, %p168
    %p170 = pneg %p169
    // Predicated region
    $region25: #{shuffle_init_block.2} parent=5 // pred_check
      _
    $region26: #{shuffle_init_block.2} parent=5 // pred_check_branch
      %172 = sbr.rel (%p169) target = $region28
    $region27: #{shuffle_init_block.2} parent=5 // pred_region
      %s173 = ssub.s32 %s11, 1
      %s174 = smul.u32 8, %s16
      %p175 = scmp.lt.s32.totalorder %s174, 15
      %s176 = scalar_select %p175, %s174, 15
      %s177 = smul.addr %s176, 4
      %s178 = scalar_lea.vmem %s0, %s177
      %p179 = pneg %p37
      %p180 = pneg %p34
      %p181 = pneg %p58
      %p182 = pneg %p55
      %p183 = pneg %p84
      %p184 = pneg %p81
      %s185 = smul.u32 8, %s16
      %p186 = scmp.lt.s32.totalorder %s185, 15
      %s187 = scalar_select %p186, %s185, 15
      %s188 = smul.addr %s187, 4
      %s189 = scalar_lea.vmem %s2, %s188
      %p190 = pneg %p110
      %p191 = pneg %p107
      %p192 = scmp.lt.s32.totalorder %s16, 1
      %s193 = scalar_select %p192, %s16, 1
      %s194 = scalar_lea.vmem %s3, %s193
      %p195 = pneg %p136
      %p196 = pneg %p133
      %p197 = scmp.lt.s32.totalorder %s16, 1
      %s198 = scalar_select %p197, %s16, 1
      %s199 = scalar_lea.vmem %s4, %s198
      %s200 = smul.u32 8, %s16
      %p201 = scmp.lt.s32.totalorder %s200, 15
      %s202 = scalar_select %p201, %s200, 15
      %s203 = smul.addr %s202, 4
      %s204 = scalar_lea.vmem %s0, %s203
      %s205 = smul.u32 8, %s16
      %s206 = smul.u32 8, %s16
      %p207 = scmp.lt.s32.totalorder %s206, 15
      %s208 = scalar_select %p207, %s206, 15
      %s209 = smul.addr %s208, 4
      %s210 = scalar_lea.vmem %s2, %s209
      %s211 = smul.u32 8, %s16
      %p212 = scmp.lt.s32.totalorder %s16, 1
      %s213 = scalar_select %p212, %s16, 1
      %s214 = scalar_lea.vmem %s3, %s213
      %p215 = scmp.lt.s32.totalorder %s16, 1
      %s216 = scalar_select %p215, %s16, 1
      %s217 = scalar_lea.vmem %s4, %s216
      %v219 = vld [vmem:[%s204] sm:$0xf]
      %v220 = vld [vmem:[%s204 + $0x4] sm:$0xf]
      %v221 = vld [vmem:[%s204 + $0x8] sm:$0xf]
      %v222 = vld [vmem:[%s204 + $0xc] sm:$0xf]
      %v223 = vld [vmem:[%s204 + $0x10] sm:$0xf]
      %v224 = vld [vmem:[%s204 + $0x14] sm:$0xf]
      %v225 = vld [vmem:[%s204 + $0x18] sm:$0xf]
      %v226 = vld [vmem:[%s204 + $0x1c] sm:$0xf]
      %v227 = vld [vmem:[%s1] sm:$0xf]
      %v228 = vld [vmem:[%s1 + $0x4] sm:$0xf]
      %v229 = vld [vmem:[%s1 + $0x8] sm:$0xf]
      %v230 = vld [vmem:[%s1 + $0xc] sm:$0xf]
      %v231 = vld [vmem:[%s1 + $0x10] sm:$0x3]
      %v240 = vunpack.c.l.b16 %v219
      %v241 = vunpack.c.l.b16 %v220
      %v242 = vunpack.c.l.b16 %v221
      %v243 = vunpack.c.l.b16 %v222
      %v244 = vunpack.c.l.b16 %v223
      %v245 = vunpack.c.l.b16 %v224
      %v246 = vunpack.c.l.b16 %v225
      %v247 = vunpack.c.l.b16 %v226
      %v248 = vpack.c.b16 %v241, %v240
      %v249 = vpack.c.b16 %v243, %v242
      %v250 = vpack.c.b16 %v245, %v244
      %v251 = vpack.c.b16 %v247, %v246
      %v257 = vunpack.c.l.b16 %v227
      %v258 = vunpack.c.l.b16 %v228
      %v259 = vunpack.c.l.b16 %v229
      %v260 = vunpack.c.l.b16 %v230
      %v261 = vunpack.c.l.b16 %v231
      %v262 = vpack.c.b16 %v258, %v257
      %v263 = vpack.c.b16 %v260, %v259
      %v264 = vpack.c.b16 %v261, %v261
      %vm267 = vcmask 293888
      %v269 = vsel %vm267, %v248, 0
      %v272 = vsel %vm267, %v249, 0
      %v275 = vsel %vm267, %v250, 0
      %v278 = vsel %vm267, %v251, 0
      %vm280 = vcmask 1041408
      %v282 = vsel %vm280, %v264, 0
      %284 = vmatpush.bf16.msra.mxu0 0
      %285 = vmatpush.bf16.msra.mxu0 0
      %286 = vmatpush.bf16.msra.mxu0 0
      %287 = vmatpush.bf16.msra.mxu0 0
      %288 = vmatpush.bf16.msra.mxu0 0
      %289 = vmatpush.bf16.msra.mxu0 %v282
      %290 = vmatpush.bf16.msra.mxu0 %v263
      %291 = vmatpush.bf16.msra.mxu0 %v262
      %292 = vmatmul.bf16.gmra.mxu0 %v269
      %v293 = vpop.f32.mrf.mxu0
      %v294 = vadd.f32 0.0, %v293
      %v295 = vpop.f32.mrf.mxu0
      %v296 = vadd.f32 0.0, %v295
      %297 = vmatmul.bf16.gmra.mxu0 %v272
      %v298 = vpop.f32.mrf.mxu0
      %v299 = vadd.f32 0.0, %v298
      %v300 = vpop.f32.mrf.mxu0
      %v301 = vadd.f32 0.0, %v300
      %302 = vmatmul.bf16.gmra.mxu0 %v275
      %v303 = vpop.f32.mrf.mxu0
      %v304 = vadd.f32 0.0, %v303
      %v305 = vpop.f32.mrf.mxu0
      %v306 = vadd.f32 0.0, %v305
      %307 = vmatmul.bf16.gmra.mxu0 %v278
      %v308 = vpop.f32.mrf.mxu0
      %v309 = vadd.f32 0.0, %v308
      %v310 = vpop.f32.mrf.mxu0
      %v311 = vadd.f32 0.0, %v310
      %312 = vdwg.mxu0
      %v313 = vpack.c.bf16 %v294, %v294
      %v314 = vpack.c.bf16 %v296, %v296
      %v315 = vpack.c.bf16 %v299, %v299
      %v316 = vpack.c.bf16 %v301, %v301
      %v317 = vpack.c.bf16 %v304, %v304
      %v318 = vpack.c.bf16 %v306, %v306
      %v319 = vpack.c.bf16 %v309, %v309
      %v320 = vpack.c.bf16 %v311, %v311
      %vm321 = vcmask 125952
      %322 = vst.msk [vmem:[%s210] sm:$0xf] %vm321, %v313
      %323 = vst.msk [vmem:[%s210 + $0x4] sm:$0xf] %vm321, %v314
      %324 = vst.msk [vmem:[%s210 + $0x8] sm:$0xf] %vm321, %v315
      %325 = vst.msk [vmem:[%s210 + $0xc] sm:$0xf] %vm321, %v316
      %326 = vst.msk [vmem:[%s210 + $0x10] sm:$0xf] %vm321, %v317
      %327 = vst.msk [vmem:[%s210 + $0x14] sm:$0xf] %vm321, %v318
      %328 = vst.msk [vmem:[%s210 + $0x18] sm:$0xf] %vm321, %v319
      %329 = vst.msk [vmem:[%s210 + $0x1c] sm:$0xf] %vm321, %v320
      %vm330 = vcmask 130048
      %v331 = vsel %vm330, %v294, 0.0
      %v332 = vsel %vm330, %v296, 0.0
      %v333 = vadd.f32 %v331, %v332
      %v334 = vsel %vm330, %v299, 0.0
      %v335 = vadd.f32 %v333, %v334
      %v336 = vsel %vm330, %v301, 0.0
      %v337 = vadd.f32 %v335, %v336
      %v338 = vsel %vm330, %v304, 0.0
      %v339 = vadd.f32 %v337, %v338
      %v340 = vsel %vm330, %v306, 0.0
      %v341 = vadd.f32 %v339, %v340
      %v342 = vsel %vm330, %v309, 0.0
      %v343 = vadd.f32 %v341, %v342
      %v344 = vsel %vm330, %v311, 0.0
      %v345 = vadd.f32 %v343, %v344
      %v346 = vrot.slane %v345, 4
      %v347 = vadd.f32 %v345, %v346
      %v348 = vrot.slane %v347, 2
      %v349 = vadd.f32 %v347, %v348
      %v350 = vrot.slane %v349, 1
      %v351 = vadd.f32 %v349, %v350
      %vm352 = vcmask 122880
      %353 = vst.msk [vmem:[%s214] sm:$0x1] %vm352, %v351
      %v354 = vmul.f32 %v294, %v294
      %v355 = vmul.f32 %v296, %v296
      %v356 = vmul.f32 %v299, %v299
      %v357 = vmul.f32 %v301, %v301
      %v358 = vmul.f32 %v304, %v304
      %v359 = vmul.f32 %v306, %v306
      %v360 = vmul.f32 %v309, %v309
      %v361 = vmul.f32 %v311, %v311
      %v362 = vsel %vm330, %v354, 0.0
      %v363 = vsel %vm330, %v355, 0.0
      %v364 = vadd.f32 %v362, %v363
      %v365 = vsel %vm330, %v356, 0.0
      %v366 = vadd.f32 %v364, %v365
      %v367 = vsel %vm330, %v357, 0.0
      %v368 = vadd.f32 %v366, %v367
      %v369 = vsel %vm330, %v358, 0.0
      %v370 = vadd.f32 %v368, %v369
      %v371 = vsel %vm330, %v359, 0.0
      %v372 = vadd.f32 %v370, %v371
      %v373 = vsel %vm330, %v360, 0.0
      %v374 = vadd.f32 %v372, %v373
      %v375 = vsel %vm330, %v361, 0.0
      %v376 = vadd.f32 %v374, %v375
      %v377 = vrot.slane %v376, 4
      %v378 = vadd.f32 %v376, %v377
      %v379 = vrot.slane %v378, 2
      %v380 = vadd.f32 %v378, %v379
      %v381 = vrot.slane %v380, 1
      %v382 = vadd.f32 %v380, %v381
      %383 = vst.msk [vmem:[%s217] sm:$0x1] %vm352, %v382
      %s384 = smul.u32 8, %s16
      %p385 = scmp.lt.s32.totalorder %s384, 15
      %s386 = scalar_select %p385, %s384, 15
      %s387 = smul.addr %s386, 4
      %s388 = scalar_lea.vmem %s2, %s387
      %p389 = scmp.lt.s32.totalorder %s16, 1
      %s390 = scalar_select %p389, %s16, 1
      %s391 = scalar_lea.vmem %s3, %s390
      %p392 = scmp.lt.s32.totalorder %s16, 1
      %s393 = scalar_select %p392, %s16, 1
      %s394 = scalar_lea.vmem %s4, %s393
      // Predicated region
      $region29: #{shuffle_init_block.2} parent=27 // pred_check
        %p395 = pneg %p81
      $region30: #{shuffle_init_block.2} parent=27 // pred_check_branch
        %397 = sbr.rel (%p395) target = $region32
      $region31: #{shuffle_init_block.2} parent=27 // pred_region
        %s398 = smul.u32 8, %s16
      $region32: #{shuffle_init_block.2} parent=27 // pred_fallthru
        _
      // Predicated region
      $region33: #{shuffle_init_block.2} parent=27 // pred_check
        %p399 = pneg %p107
      $region34: #{shuffle_init_block.2} parent=27 // pred_check_branch
        %401 = sbr.rel (%p399) target = $region36
      $region35: #{shuffle_init_block.2} parent=27 // pred_region
        _
      $region36: #{shuffle_init_block.2} parent=27 // pred_fallthru
        _
      // Predicated region
      $region37: #{shuffle_init_block.2} parent=27 // pred_check
        %p402 = pneg %p133
      $region38: #{shuffle_init_block.2} parent=27 // pred_check_branch
        %404 = sbr.rel (%p402) target = $region40
      $region39: #{shuffle_init_block.2} parent=27 // pred_region
        _
      $region40: #{shuffle_init_block.2} parent=27 // pred_fallthru
        _
    $region28: #{shuffle_init_block.2} parent=5 // pred_fallthru
      _
    %p405 = scmp.le.s32.totalorder 2, %s11
    // Predicated region
    $region41: #{shuffle_init_block.2} parent=5 // pred_check
      %p406 = pneg %p405
    $region42: #{shuffle_init_block.2} parent=5 // pred_check_branch
      %408 = sbr.rel (%p406) target = $region44
    $region43: #{shuffle_init_block.2} parent=5 // pred_region
      %s409 = ssub.s32 %s11, 2
      // Predicated region
      $region45: #{shuffle_init_block.2} parent=43 // pred_check
        %p410 = pneg %p87
      $region46: #{shuffle_init_block.2} parent=43 // pred_check_branch
        %412 = sbr.rel (%p410) target = $region48
      $region47: #{shuffle_init_block.2} parent=43 // pred_region
        %s413 = smul.u32 8, %s17
        %p414 = scmp.lt.s32.totalorder %s413, 15
        %s415 = scalar_select %p414, %s413, 15
        %s416 = smul.addr %s415, 4
        %s417 = scalar_lea.vmem %s2, %s416
      $region48: #{shuffle_init_block.2} parent=43 // pred_fallthru
        _
      // Predicated region
      $region49: #{shuffle_init_block.2} parent=43 // pred_check
        %p418 = pneg %p113
      $region50: #{shuffle_init_block.2} parent=43 // pred_check_branch
        %420 = sbr.rel (%p418) target = $region52
      $region51: #{shuffle_init_block.2} parent=43 // pred_region
        %p421 = scmp.lt.s32.totalorder %s17, 1
        %s422 = scalar_select %p421, %s17, 1
        %s423 = scalar_lea.vmem %s3, %s422
      $region52: #{shuffle_init_block.2} parent=43 // pred_fallthru
        _
      // Predicated region
      $region53: #{shuffle_init_block.2} parent=43 // pred_check
        %p424 = pneg %p139
      $region54: #{shuffle_init_block.2} parent=43 // pred_check_branch
        %426 = sbr.rel (%p424) target = $region56
      $region55: #{shuffle_init_block.2} parent=43 // pred_region
        %p427 = scmp.lt.s32.totalorder %s17, 1
        %s428 = scalar_select %p427, %s17, 1
        %s429 = scalar_lea.vmem %s4, %s428
      $region56: #{shuffle_init_block.2} parent=43 // pred_fallthru
        _
    $region44: #{shuffle_init_block.2} parent=5 // pred_fallthru
      _
  $region6: #{shuffle_init_block.2} parent=0 // loop_footer
    %s15 = sadd.s32 1, %s11
  $region7: #{shuffle_init_block.2} parent=0 // loop_footer_branch
    %10 = sbr.rel target = $region3
  $region8: #{shuffle_init_block.2} parent=0 // loop_exit
    _

// kernel: shuffle_init_block.3
$region0: #{shuffle_init_block.3}
  #allocation0 [shape = 'u32[]', space=smem, size = 0x4, offset = 0x4, fixed_abs, tag = 'smem constant byte address 0x4 - core index']
  #allocation1 [shape = 'u32[72,128]{1,0:T(1,128)}', space=vmem, size = 0x9000, scoped, tag = 'internal scratch']
  #allocation2 [shape = 'f32[5,9,16]{2,1,0:T(8,128)}', space=vmem, size = 0xa000, scoped, tag = 'scratch operand']
  #allocation3 [shape = 'f32[2,9,16]{2,1,0:T(8,128)}', space=vmem, size = 0x4000, scoped, tag = 'scratch operand']
  %s0 = inlined_call_operand.vmem [shape: bf16[2,8,8,16], index: 0, kind: input, shape index: {}, may-alias: {0,1}]
  %s1 = inlined_call_operand.vmem [shape: bf16[2,8,8,16], index: 1, kind: input, shape index: {}, may-alias: {0,1}]
  %s2 = inlined_call_operand.vmem [shape: f32[1,16], index: 2, kind: input, shape index: {}]
  %s3 = inlined_call_operand.vmem [shape: f32[1,16], index: 3, kind: input, shape index: {}]
  %s4 = inlined_call_operand.hbm [shape: f32[2,4,4,16], index: 4, kind: output, shape index: {}]
  %s5 = sld [smem:[#allocation0]]
  $region49: #{shuffle_init_block.3} parent=0
    _
  %s7 = ssub.s32 1, %s5
  %s8 = scalar_select 0, %s7, %s5
  $region1: #{shuffle_init_block.3} parent=0
    #allocation4 [shape = 'u8[8192]{0}', space=vmem, size = 0x2000, scoped, tag = 'output window, operand 0']
    #allocation5 [shape = 's32[2]{0}', space=sflag, size = 0x8, scoped, tag = 'scoped memory for shuffle_init_block.3']
    %9 = vsyncpa [#allocation5], 0
    %s10 = scalar_lea.sflag [#allocation5], 1
    %11 = vsyncpa %s10, 0
    loop: start=0, step=1, limit=6
    $region2: #{shuffle_init_block.3} parent=1 // loop_pre_header
      _
    $region3: #{shuffle_init_block.3} parent=1 // loop_header
      %s13 = sphi 0, %s17
      %p14 = scmp.ge.s32.totalorder %s13, 6
      %s20 = sphi 0, %s32
      %s21 = sphi 0, %s28
      %s22 = sphi 0, %s20
      %s23 = sphi 0, %s21
      %s24 = sphi 0, %s22
      %s25 = sphi 0, %s23
      %s37 = sphi 0, %s39
      %s40 = sphi 0, %s37
      %s41 = sphi 0, %s40
      %s57 = sphi 0, %s41
      %s73 = sphi 0, %s75
      %s76 = sphi 0, %s73
      %s77 = sphi 0, %s76
      %s93 = sphi 0, %s77
      %s97 = sphi 0, %s97
      %s99 = sphi 0, %s97
      %s100 = sphi 0, %s99
      %s114 = sphi 0, %s100
      %s118 = sphi 0, %s118
      %s120 = sphi 0, %s118
      %s121 = sphi 0, %s120
      %s135 = sphi 0, %s121
      %s143 = sphi 0, %s145
      %s146 = sphi 0, %s143
      %s147 = sphi 0, %s146
      %s163 = sphi 0, %s147
    $region4: #{shuffle_init_block.3} parent=1 // loop_header_branch
      %16 = sbr.rel (%p14) target = $region8
    $region5: #{shuffle_init_block.3} parent=1 // loop_body
      %s18 = ssub.s32 %s13, 1
      %s19 = ssub.s32 %s13, 2
      %s26 = sadd.s32 1, %s21
      %p27 = scmp.ge.s32.totalorder %s26, 2
      %s28 = scalar_select %p27, 0, %s26
      %s29 = sadd.s32 1, %s20
      %s30 = scalar_select %p27, %s29, %s20
      %p31 = scmp.ge.s32.totalorder %s30, 2
      %s32 = scalar_select %p31, 0, %s30
      %s33 = ssub.s32 %s20, %s32
      %s34 = ssub.s32 %s21, %s28
      %s35 = sor.u32 %s33, %s34
      %p36 = scmp.eq.s32.totalorder %s35, 0
      %s38 = sadd.s32 %s37, 1
      %s39 = scalar_select %p36, %s37, %s38
      %p42 = pneg %p36
      %p43 = scmp.eq.s32.totalorder %s13, 3
      %p44 = por %p42, %p43
      %p45 = scmp.ne.s32.totalorder %s37, %s40
      %p46 = scmp.eq.s32.totalorder %s13, 0
      %p47 = por %p45, %p46
      %p48 = scmp.ne.s32.totalorder %s37, %s40
      %p49 = scmp.eq.s32.totalorder %s18, 3
      %p50 = por %p48, %p49
      %p51 = scmp.ne.s32.totalorder %s40, %s41
      %p52 = scmp.eq.s32.totalorder %s18, 0
      %p53 = por %p51, %p52
      %p54 = scmp.ne.s32.totalorder %s40, %s41
      %p55 = scmp.eq.s32.totalorder %s19, 3
      %p56 = por %p54, %p55
      %p58 = scmp.ne.s32.totalorder %s41, %s57
      %p59 = scmp.eq.s32.totalorder %s19, 0
      %p60 = por %p58, %p59
      %s61 = smul.u32 %s21, 4
      %s62 = ssub.s32 %s61, 1
      %p63 = scmp.gt.s32.totalorder %s62, 0
      %s64 = scalar_select %p63, %s62, 0
      %s65 = smul.u32 %s28, 4
      %s66 = ssub.s32 %s65, 1
      %p67 = scmp.gt.s32.totalorder %s66, 0
      %s68 = scalar_select %p67, %s66, 0
      %s69 = ssub.s32 %s20, %s32
      %s70 = ssub.s32 %s64, %s68
      %s71 = sor.u32 %s69, %s70
      %p72 = scmp.eq.s32.totalorder %s71, 0
      %s74 = sadd.s32 %s73, 1
      %s75 = scalar_select %p72, %s73, %s74
      %p78 = pneg %p72
      %p79 = scmp.eq.s32.totalorder %s13, 3
      %p80 = por %p78, %p79
      %p81 = scmp.ne.s32.totalorder %s73, %s76
      %p82 = scmp.eq.s32.totalorder %s13, 0
      %p83 = por %p81, %p82
      %p84 = scmp.ne.s32.totalorder %s73, %s76
      %p85 = scmp.eq.s32.totalorder %s18, 3
      %p86 = por %p84, %p85
      %p87 = scmp.ne.s32.totalorder %s76, %s77
      %p88 = scmp.eq.s32.totalorder %s18, 0
      %p89 = por %p87, %p88
      %p90 = scmp.ne.s32.totalorder %s76, %s77
      %p91 = scmp.eq.s32.totalorder %s19, 3
      %p92 = por %p90, %p91
      %p94 = scmp.ne.s32.totalorder %s77, %s93
      %p95 = scmp.eq.s32.totalorder %s19, 0
      %p96 = por %p94, %p95
      %s98 = sadd.s32 %s97, 1
      %p101 = scmp.eq.s32.totalorder %s13, 3
      %p102 = scmp.ne.s32.totalorder %s97, %s99
      %p103 = scmp.eq.s32.totalorder %s13, 0
      %p104 = por %p102, %p103
      %p105 = scmp.ne.s32.totalorder %s97, %s99
      %p106 = scmp.eq.s32.totalorder %s18, 3
      %p107 = por %p105, %p106
      %p108 = scmp.ne.s32.totalorder %s99, %s100
      %p109 = scmp.eq.s32.totalorder %s18, 0
      %p110 = por %p108, %p109
      %p111 = scmp.ne.s32.totalorder %s99, %s100
      %p112 = scmp.eq.s32.totalorder %s19, 3
      %p113 = por %p111, %p112
      %p115 = scmp.ne.s32.totalorder %s100, %s114
      %p116 = scmp.eq.s32.totalorder %s19, 0
      %p117 = por %p115, %p116
      %s119 = sadd.s32 %s118, 1
      %p122 = scmp.eq.s32.totalorder %s13, 3
      %p123 = scmp.ne.s32.totalorder %s118, %s120
      %p124 = scmp.eq.s32.totalorder %s13, 0
      %p125 = por %p123, %p124
      %p126 = scmp.ne.s32.totalorder %s118, %s120
      %p127 = scmp.eq.s32.totalorder %s18, 3
      %p128 = por %p126, %p127
      %p129 = scmp.ne.s32.totalorder %s120, %s121
      %p130 = scmp.eq.s32.totalorder %s18, 0
      %p131 = por %p129, %p130
      %p132 = scmp.ne.s32.totalorder %s120, %s121
      %p133 = scmp.eq.s32.totalorder %s19, 3
      %p134 = por %p132, %p133
      %p136 = scmp.ne.s32.totalorder %s121, %s135
      %p137 = scmp.eq.s32.totalorder %s19, 0
      %p138 = por %p136, %p137
      %s139 = ssub.s32 %s20, %s32
      %s140 = ssub.s32 %s21, %s28
      %s141 = sor.u32 %s139, %s140
      %p142 = scmp.eq.s32.totalorder %s141, 0
      %s144 = sadd.s32 %s143, 1
      %s145 = scalar_select %p142, %s143, %s144
      %p148 = pneg %p142
      %p149 = scmp.eq.s32.totalorder %s13, 3
      %p150 = por %p148, %p149
      %p151 = scmp.ne.s32.totalorder %s143, %s146
      %p152 = scmp.eq.s32.totalorder %s13, 0
      %p153 = por %p151, %p152
      %p154 = scmp.ne.s32.totalorder %s143, %s146
      %p155 = scmp.eq.s32.totalorder %s18, 3
      %p156 = por %p154, %p155
      %p157 = scmp.ne.s32.totalorder %s146, %s147
      %p158 = scmp.eq.s32.totalorder %s18, 0
      %p159 = por %p157, %p158
      %p160 = scmp.ne.s32.totalorder %s146, %s147
      %p161 = scmp.eq.s32.totalorder %s19, 3
      %p162 = por %p160, %p161
      %p164 = scmp.ne.s32.totalorder %s147, %s163
      %p165 = scmp.eq.s32.totalorder %s19, 0
      %p166 = por %p164, %p165
      %p167 = scmp.le.s32.totalorder 1, %s13
      %p168 = scmp.lt.s32.totalorder %s13, 5
      %p169 = pnand %p167, %p168
      %p170 = pneg %p169
      // Predicated region
      $region9: #{shuffle_init_block.3} parent=5 // pred_check
        _
      $region10: #{shuffle_init_block.3} parent=5 // pred_check_branch
        %172 = sbr.rel (%p169) target = $region12
      $region11: #{shuffle_init_block.3} parent=5 // pred_region
        %s173 = ssub.s32 %s13, 1
        // Predicated region
        $region13: #{shuffle_init_block.3} parent=11 // pred_check
          %p174 = pneg %p110
        $region14: #{shuffle_init_block.3} parent=11 // pred_check_branch
          %176 = sbr.rel (%p174) target = $region16
        $region15: #{shuffle_init_block.3} parent=11 // pred_region
          _
        $region16: #{shuffle_init_block.3} parent=11 // pred_fallthru
          _
        // Predicated region
        $region17: #{shuffle_init_block.3} parent=11 // pred_check
          %p177 = pneg %p131
        $region18: #{shuffle_init_block.3} parent=11 // pred_check_branch
          %179 = sbr.rel (%p177) target = $region20
        $region19: #{shuffle_init_block.3} parent=11 // pred_region
          _
        $region20: #{shuffle_init_block.3} parent=11 // pred_fallthru
          _
      $region12: #{shuffle_init_block.3} parent=5 // pred_fallthru
        _
      %p180 = scmp.lt.s32.totalorder %s13, 4
      // Predicated region
      $region21: #{shuffle_init_block.3} parent=5 // pred_check
        %p181 = pneg %p180
      $region22: #{shuffle_init_block.3} parent=5 // pred_check_branch
        %183 = sbr.rel (%p181) target = $region24
      $region23: #{shuffle_init_block.3} parent=5 // pred_region
        // Predicated region
        $region25: #{shuffle_init_block.3} parent=23 // pred_check
          %p184 = pneg %p47
        $region26: #{shuffle_init_block.3} parent=23 // pred_check_branch
          %186 = sbr.rel (%p184) target = $region28
        $region27: #{shuffle_init_block.3} parent=23 // pred_region
          %s187 = smul.u32 4, %s21
          %p188 = scmp.lt.s32.totalorder %s20, 1
          %s189 = scalar_select %p188, %s20, 1
          %p190 = scmp.lt.s32.totalorder %s187, 7
          %s191 = scalar_select %p190, %s187, 7
          %s192 = smul.addr %s189, 8
          %s193 = sadd.s32 %s191, %s192
          %s194 = smul.addr %s193, 4
          %s195 = scalar_lea.vmem %s0, %s194
          %s196 = smul.u32 4, %s21
        $region28: #{shuffle_init_block.3} parent=23 // pred_fallthru
          _
        // Predicated region
        $region29: #{shuffle_init_block.3} parent=23 // pred_check
          %p197 = pneg %p83
        $region30: #{shuffle_init_block.3} parent=23 // pred_check_branch
          %199 = sbr.rel (%p197) target = $region32
        $region31: #{shuffle_init_block.3} parent=23 // pred_region
          %s200 = smul.u32 %s21, 4
          %s201 = ssub.s32 %s200, 1
          %p202 = scmp.gt.s32.totalorder %s201, 0
          %s203 = scalar_select %p202, %s201, 0
          %p204 = scmp.lt.s32.totalorder %s20, 1
          %s205 = scalar_select %p204, %s20, 1
          %p206 = scmp.lt.s32.totalorder %s203, 7
          %s207 = scalar_select %p206, %s203, 7
          %s208 = smul.addr %s205, 8
          %s209 = sadd.s32 %s207, %s208
          %s210 = smul.addr %s209, 4
          %s211 = scalar_lea.vmem %s1, %s210
          %s212 = smul.u32 %s21, 4
          %s213 = ssub.s32 %s212, 1
          %p214 = scmp.gt.s32.totalorder %s213, 0
          %s215 = scalar_select %p214, %s213, 0
        $region32: #{shuffle_init_block.3} parent=23 // pred_fallthru
          _
      $region24: #{shuffle_init_block.3} parent=5 // pred_fallthru
        _
      %p216 = scmp.le.s32.totalorder 1, %s13
      %p217 = scmp.lt.s32.totalorder %s13, 5
      %p218 = pnand %p216, %p217
      %p219 = pneg %p218
      // Predicated region
      $region33: #{shuffle_init_block.3} parent=5 // pred_check
        _
      $region34: #{shuffle_init_block.3} parent=5 // pred_check_branch
        %221 = sbr.rel (%p218) target = $region36
      $region35: #{shuffle_init_block.3} parent=5 // pred_region
        %s222 = ssub.s32 %s13, 1
        %s223 = smul.u32 4, %s23
        %p224 = scmp.lt.s32.totalorder %s22, 1
        %s225 = scalar_select %p224, %s22, 1
        %p226 = scmp.lt.s32.totalorder %s223, 7
        %s227 = scalar_select %p226, %s223, 7
        %s228 = smul.addr %s225, 8
        %s229 = sadd.s32 %s227, %s228
        %s230 = smul.addr %s229, 4
        %s231 = scalar_lea.vmem %s0, %s230
        %p232 = pneg %p53
        %p233 = pneg %p50
        %s234 = smul.u32 %s23, 4
        %s235 = ssub.s32 %s234, 1
        %p236 = scmp.gt.s32.totalorder %s235, 0
        %s237 = scalar_select %p236, %s235, 0
        %p238 = scmp.lt.s32.totalorder %s22, 1
        %s239 = scalar_select %p238, %s22, 1
        %p240 = scmp.lt.s32.totalorder %s237, 7
        %s241 = scalar_select %p240, %s237, 7
        %s242 = smul.addr %s239, 8
        %s243 = sadd.s32 %s241, %s242
        %s244 = smul.addr %s243, 4
        %s245 = scalar_lea.vmem %s1, %s244
        %p246 = pneg %p89
        %p247 = pneg %p86
        %p248 = pneg %p110
        %p249 = pneg %p107
        %p250 = pneg %p131
        %p251 = pneg %p128
        %p252 = pneg %p159
        %p253 = pneg %p156
        %s254 = sand.u32 %s146, 1
        %s255 = scalar_lea.sflag [#allocation5], %s254
        %s256 = sand.u32 %s146, 1
        %s257 = smul.addr %s256, 8
        %s258 = scalar_lea.vmem [#allocation4], %s257
        %s259 = smul.u32 4, %s23
        %p260 = scmp.lt.s32.totalorder %s22, 1
        %s261 = scalar_select %p260, %s22, 1
        %p262 = scmp.lt.s32.totalorder %s259, 7
        %s263 = scalar_select %p262, %s259, 7
        %s264 = smul.addr %s261, 8
        %s265 = sadd.s32 %s263, %s264
        %s266 = smul.addr %s265, 4
        %s267 = scalar_lea.vmem %s0, %s266
        %s268 = smul.u32 4, %s23
        %s269 = smul.u32 %s23, 4
        %s270 = ssub.s32 %s269, 1
        %p271 = scmp.gt.s32.totalorder %s270, 0
        %s272 = scalar_select %p271, %s270, 0
        %p273 = scmp.lt.s32.totalorder %s22, 1
        %s274 = scalar_select %p273, %s22, 1
        %p275 = scmp.lt.s32.totalorder %s272, 7
        %s276 = scalar_select %p275, %s272, 7
        %s277 = smul.addr %s274, 8
        %s278 = sadd.s32 %s276, %s277
        %s279 = smul.addr %s278, 4
        %s280 = scalar_lea.vmem %s1, %s279
        %s281 = smul.u32 %s23, 4
        %s282 = ssub.s32 %s281, 1
        %p283 = scmp.gt.s32.totalorder %s282, 0
        %s284 = scalar_select %p283, %s282, 0
        %s285 = smul.u32 2, %s23
        %v286 = vld [vmem:[%s2] sm:$0x1]
        %v287 = vld [vmem:[%s3] sm:$0x1]
        %vm288 = vcmask 122880
        %289 = vst.msk [vmem:[#allocation2] sm:$0x1] %vm288, 0.0
        %290 = vst.msk [vmem:[#allocation2 + $0x10] sm:$0x1] %vm288, 0.0
        %291 = vst.msk [vmem:[#allocation2 + $0x20] sm:$0x1] %vm288, 0.0
        %292 = vst.msk [vmem:[#allocation2 + $0x30] sm:$0x1] %vm288, 0.0
        %293 = vst.msk [vmem:[#allocation2 + $0x40] sm:$0x1] %vm288, 0.0
        %v294 = vld [vmem:[%s280] sm:$0xf]
        %v295 = vunpack.c.l.bf16 %v294
        %v297 = vperm.slane %v286, 0
        %v299 = vmul.f32 %v295, %v297
        %v301 = vperm.slane %v287, 0
        %v303 = vadd.f32 %v299, %v301
        %v304 = vmax.f32 %v303, 0.0
        %v305 = vld [vmem:[%s267] sm:$0xf]
        %v306 = vld [vmem:[%s267 + $0x4] sm:$0xf]
        %v307 = vld [vmem:[%s267 + $0x8] sm:$0xf]
        %v308 = vld [vmem:[%s267 + $0xc] sm:$0xf]
        %v309 = vunpack.c.l.bf16 %v305
        %v310 = vunpack.c.l.bf16 %v306
        %v311 = vunpack.c.l.bf16 %v307
        %v312 = vunpack.c.l.bf16 %v308
        %v313 = vmul.f32 %v309, %v297
        %v314 = vmul.f32 %v310, %v297
        %v315 = vmul.f32 %v311, %v297
        %v316 = vmul.f32 %v312, %v297
        %v317 = vadd.f32 %v313, %v301
        %v318 = vadd.f32 %v314, %v301
        %v319 = vadd.f32 %v315, %v301
        %v320 = vadd.f32 %v316, %v301
        %v321 = vmax.f32 %v317, 0.0
        %v322 = vmax.f32 %v318, 0.0
        %v323 = vmax.f32 %v319, 0.0
        %v324 = vmax.f32 %v320, 0.0
        %vm325 = vcmask 130048
        %326 = vst.msk [vmem:[#allocation2 + $0x1] sm:$0xff] %vm325, %v304
        %s327 = scalar_lea.vmem [#allocation2], 16
        %328 = vst.msk [vmem:[%s327 + $0x1] sm:$0xff] %vm325, %v321
        %329 = vst.msk [vmem:[%s327 + $0x11] sm:$0xff] %vm325, %v322
        %330 = vst.msk [vmem:[%s327 + $0x21] sm:$0xff] %vm325, %v323
        %331 = vst.msk [vmem:[%s327 + $0x31] sm:$0xff] %vm325, %v324
        %v332 = vld [vmem:[#allocation2] sm:$0xff]
        %v333 = vld [vmem:[#allocation2 + $0x8] sm:$0x1]
        %v334 = vld [vmem:[#allocation2 + $0x20] sm:$0xff]
        %v335 = vld [vmem:[#allocation2 + $0x28] sm:$0x1]
        %v336 = vld [vmem:[%s327] sm:$0xff]
        %v337 = vld [vmem:[%s327 + $0x8] sm:$0x1]
        %v338 = vld [vmem:[%s327 + $0x20] sm:$0xff]
        %v339 = vld [vmem:[%s327 + $0x28] sm:$0x1]
        %v340 = vmax.f32 %v332, %v336
        %v341 = vmax.f32 %v333, %v337
        %v342 = vmax.f32 %v334, %v338
        %v343 = vmax.f32 %v335, %v339
        %s344 = scalar_lea.vmem [#allocation2], 32
        %v345 = vld [vmem:[%s344] sm:$0xff]
        %v346 = vld [vmem:[%s344 + $0x8] sm:$0x1]
        %v347 = vld [vmem:[%s344 + $0x20] sm:$0xff]
        %v348 = vld [vmem:[%s344 + $0x28] sm:$0x1]
        %v349 = vmax.f32 %v340, %v345
        %v350 = vmax.f32 %v341, %v346
        %v351 = vmax.f32 %v342, %v347
        %v352 = vmax.f32 %v343, %v348
        %353 = vst.msk [vmem:[#allocation3] sm:$0xff] %vm325, %v349
        %354 = vst.msk [vmem:[#allocation3 + $0x8] sm:$0x1] %vm288, %v350
        %355 = vst.msk [vmem:[#allocation3 + $0x10] sm:$0xff] %vm325, %v351
        %356 = vst.msk [vmem:[#allocation3 + $0x18] sm:$0x1] %vm288, %v352
        %v357 = vld [vmem:[#allocation3] ss:$2 sm:$0xf]
        %s358 = scalar_lea.vmem [#allocation3], 16
        %v359 = vld [vmem:[%s358] ss:$2 sm:$0xf]
        %s360 = scalar_lea.vmem [#allocation3], 1
        %v361 = vld [vmem:[%s360] ss:$2 sm:$0xf]
        %s362 = scalar_lea.vmem [#allocation3], 17
        %v363 = vld [vmem:[%s362] ss:$2 sm:$0xf]
        %v364 = vmax.f32 %v357, %v361
        %v365 = vmax.f32 %v359, %v363
        %s366 = scalar_lea.vmem [#allocation3], 2
        %v367 = vld [vmem:[%s366] ss:$2 sm:$0xf]
        %s368 = scalar_lea.vmem [#allocation3], 18
        %v369 = vld [vmem:[%s368] ss:$2 sm:$0xf]
        %v370 = vmax.f32 %v364, %v367
        %v371 = vmax.f32 %v365, %v369
        %vm372 = vcmask 125952
        %373 = vst.msk [vmem:[%s258] sm:$0xf] %vm372, %v370
        %374 = vst.msk [vmem:[%s258 + $0x4] sm:$0xf] %vm372, %v371
        %s375 = sand.u32 %s146, 1
        %s376 = scalar_lea.sflag [#allocation5], %s375
        %s377 = sand.u32 %s146, 1
        %s378 = smul.addr %s377, 8
        %s379 = scalar_lea.vmem [#allocation4], %s378
        // Predicated region
        $region37: #{shuffle_init_block.3} parent=35 // pred_check
          %p380 = pneg %p156
        $region38: #{shuffle_init_block.3} parent=35 // pred_check_branch
          %382 = sbr.rel (%p380) target = $region40
        $region39: #{shuffle_init_block.3} parent=35 // pred_region
          %s383 = smul.u32 2, %s23
          %385 = vsyncadd %s376, 0
          %s386 = smul.addr %s22, 4
          %s387 = sadd.s32 %s383, %s386
          %s388 = smul.addr %s387, 4
          %s389 = scalar_lea.hbm %s4, %s388
          %s390 = sshll.u32 %s379, 4
          %s391 = int_to_ptr.vmem [resolvable:$true] %s390
          %s392 = sshll.u32 %s389, 4
          %s393 = int_to_ptr.hbm [resolvable:$true] %s392
          %398 = dma.vmem_to_hbm [thread:$0]  %s391, 128, %s393, %s376, 64, 64, 4
        $region40: #{shuffle_init_block.3} parent=35 // pred_fallthru
          _
      $region36: #{shuffle_init_block.3} parent=5 // pred_fallthru
        _
      %p399 = scmp.le.s32.totalorder 2, %s13
      // Predicated region
      $region41: #{shuffle_init_block.3} parent=5 // pred_check
        %p400 = pneg %p399
      $region42: #{shuffle_init_block.3} parent=5 // pred_check_branch
        %402 = sbr.rel (%p400) target = $region44
      $region43: #{shuffle_init_block.3} parent=5 // pred_region
        %s403 = ssub.s32 %s13, 2
        // Predicated region
        $region45: #{shuffle_init_block.3} parent=43 // pred_check
          %p404 = pneg %p162
        $region46: #{shuffle_init_block.3} parent=43 // pred_check_branch
          %406 = sbr.rel (%p404) target = $region48
        $region47: #{shuffle_init_block.3} parent=43 // pred_region
          %s407 = sand.u32 %s147, 1
          %s408 = scalar_lea.sflag [#allocation5], %s407
          %s409 = sand.u32 %s147, 1
          %s410 = smul.addr %s409, 8
          %s411 = scalar_lea.vmem [#allocation4], %s410
          %413 = dma.done %s408, 128
        $region48: #{shuffle_init_block.3} parent=43 // pred_fallthru
          _
      $region44: #{shuffle_init_block.3} parent=5 // pred_fallthru
        _
    $region6: #{shuffle_init_block.3} parent=1 // loop_footer
      %s17 = sadd.s32 1, %s13
    $region7: #{shuffle_init_block.3} parent=1 // loop_footer_branch
      %12 = sbr.rel target = $region3
    $region8: #{shuffle_init_block.3} parent=1 // loop_exit
      _
    %414 = vsyncpa [#allocation5], 1
    %s415 = scalar_lea.sflag [#allocation5], 1
    %416 = vsyncpa %s415, 1

</llo_original>
